<compile_context>
chip_gen: v7x
topology: tpu7x:2x2x1
jax: 0.10.0
libtpu: 0.0.40
codegen_flags: <defaults>
</compile_context>

<pallas_src>
import jax
import jax.numpy as jnp
from jax import lax
from jax.experimental import pallas as pl
from jax.experimental.pallas import tpu as pltpu


def _l_spa_kernel(org_ref, enh_ref, pwc_ref, ph3_ref, o_ref, dp_ref):
    # org_ref/enh_ref: (TILE_B, C*H, W)  native dtype
    # pwc_ref: (W, 3*wp)   [pool | pool@ml | pool@mr], input dtype
    # ph3_ref: (3*hp, C*H) [mean+pool_h ; mu@ ; md@], f32
    # o_ref:   (TILE_B, hp, wp) f32
    # dp_ref:  (TILE_B*C*H, 3*wp) f32 scratch (pooled org-enh difference)
    tile_b, ch, w = org_ref.shape
    hp, wp = o_ref.shape[1], o_ref.shape[2]

    pwc = pwc_ref[...]
    ph3 = ph3_ref[...]

    # Stage 1: one tile-wide large-M matmul per tensor (native dtype into the
    # MXU, f32 accumulation), subtract on the 4x-reduced pooled result.
    x = org_ref[...].reshape(tile_b * ch, w)
    e = enh_ref[...].reshape(tile_b * ch, w)
    p_org = jnp.dot(x, pwc, preferred_element_type=jnp.float32)
    p_enh = jnp.dot(e, pwc, preferred_element_type=jnp.float32)
    dp_ref[...] = p_org - p_enh

    # Stage 2: tiny per-image contraction on the 16x-downsampled map.
    def body(i, carry):
        row0 = pl.multiple_of(i * ch, ch)
        dpi = dp_ref[pl.ds(row0, ch), :]                                 # (C*H, 3*wp)
        s = jnp.dot(ph3, dpi, preferred_element_type=jnp.float32)        # (3*hp, 3*wp)
        dl = s[0:hp, wp:2 * wp]          # d @ ml  (left diff)
        dr = s[0:hp, 2 * wp:3 * wp]      # d @ mr  (right diff)
        du = s[hp:2 * hp, 0:wp]          # mu @ d  (up diff)
        dd = s[2 * hp:3 * hp, 0:wp]      # md @ d  (down diff)
        o_ref[i] = dl * dl + dr * dr + du * du + dd * dd
        return carry

    lax.fori_loop(0, tile_b, body, 0, unroll=(tile_b <= 4))


def _vmem_capacity_bytes():
    try:
        info = pltpu.get_tpu_info()
        cap = getattr(info, "vmem_capacity_bytes", None)
        if cap:
            return int(cap)
    except Exception:
        pass
    return 64 * 1024 * 1024  # conservative (v7x-sized) fallback


def l_spa_pallas(org, enhance):
    b, c, h, w = org.shape
    assert h % 4 == 0 and w % 4 == 0, "AvgPool2d(4) requires H, W divisible by 4"
    hp, wp = h // 4, w // 4
    ch = c * h

    # Free metadata reshape: (B, C, H, W) -> (B, C*H, W).
    org3 = org.reshape(b, ch, w)
    enh3 = enhance.reshape(b, ch, w)

    # Generation-aware VMEM budgeting (64 MiB/TC on v7x, 128 MiB on v5e/v6e).
    vmem_cap = _vmem_capacity_bytes()
    vmem_limit = int(vmem_cap * 5 // 8)      # ~40 MiB on v7x, ~80 MiB on v5e/v6e
    budget = int(vmem_cap * 35 // 100)       # ~22 MiB on v7x, ~45 MiB on v5e/v6e

    itemsize = jnp.dtype(org.dtype).itemsize
    pad_cols = ((3 * wp + 127) // 128) * 128  # lane padding of the f32 temporaries
    per_img = (6 * ch * w * itemsize          # double-buffered org+enh blocks + value copies
               + 3 * ch * pad_cols * 4)       # p_org, p_enh, dp scratch (f32)
    tile_b = max(1, min(b, budget // max(per_img, 1)))
    if b >= 2:
        tile_b = min(tile_b, (b + 1) // 2)    # >=2 grid steps so v7x uses both TensorCores
    grid = (pl.cdiv(b, tile_b),)
    # TODO(synk): for a single image whose double-buffered footprint exceeds the
    # VMEM budget, an extra H-chunk grid axis with a pooled-row accumulator would be needed.

    f32 = jnp.float32
    eye_hp = jnp.eye(hp, dtype=f32)
    eye_wp = jnp.eye(wp, dtype=f32)
    # Channel-mean + H-pool matrix: ph[r, c*H + hh] = 1/(4C) for hh in [4r, 4r+4).
    ph = jnp.tile(jnp.repeat(eye_hp, 4, axis=1), (1, c)) * (0.25 / c)   # (hp, C*H)
    # W-pool matrix.
    pw = jnp.repeat(eye_wp, 4, axis=0) * 0.25                           # (W, wp)
    # Directional difference matrices (identity minus zero-padded shift).
    ml = eye_wp - jnp.eye(wp, k=1, dtype=f32)    # d @ ml -> d[i,j]-d[i,j-1]
    mr = eye_wp - jnp.eye(wp, k=-1, dtype=f32)   # d @ mr -> d[i,j]-d[i,j+1]
    mu = eye_hp - jnp.eye(hp, k=-1, dtype=f32)   # mu @ d -> d[i,j]-d[i-1,j]
    md = eye_hp - jnp.eye(hp, k=1, dtype=f32)    # md @ d -> d[i,j]-d[i+1,j]
    # Fold left/right diffs into the W-pool matrix (entries 0/±0.25, exact in
    # bf16 too) and up/down diffs into the channel-mean + H-pool matrix.
    pwc = jnp.concatenate([pw, pw @ ml, pw @ mr], axis=1).astype(org.dtype)  # (W, 3*wp)
    ph3 = jnp.concatenate([ph, mu @ ph, md @ ph], axis=0)                    # (3*hp, C*H)

    grid_spec = pltpu.PrefetchScalarGridSpec(
        num_scalar_prefetch=0,
        grid=grid,
        in_specs=[
            pl.BlockSpec((tile_b, ch, w), lambda i: (i, 0, 0)),
            pl.BlockSpec((tile_b, ch, w), lambda i: (i, 0, 0)),
            pl.BlockSpec((w, 3 * wp), lambda i: (0, 0)),
            pl.BlockSpec((3 * hp, ch), lambda i: (0, 0)),
        ],
        out_specs=pl.BlockSpec((tile_b, hp, wp), lambda i: (i, 0, 0)),
        scratch_shapes=[pltpu.VMEM((tile_b * ch, 3 * wp), jnp.float32)],
    )

    out = pl.pallas_call(
        _l_spa_kernel,
        out_shape=jax.ShapeDtypeStruct((b, hp, wp), jnp.float32),
        grid_spec=grid_spec,
        compiler_params=pltpu.CompilerParams(
            dimension_semantics=("parallel",),
            vmem_limit_bytes=vmem_limit,
        ),
    )(org3, enh3, pwc, ph3)

    return out.reshape(b, 1, hp, wp)


def l_spa_ref(org, enhance):
    """Pure-JAX reference mirroring the PyTorch forward."""
    om = jnp.mean(org.astype(jnp.float32), axis=1, keepdims=True)
    em = jnp.mean(enhance.astype(jnp.float32), axis=1, keepdims=True)

    def pool4(x):
        b, _, h, w = x.shape
        return x.reshape(b, 1, h // 4, 4, w // 4, 4).mean(axis=(3, 5))

    op, ep = pool4(om), pool4(em)

    def directional(p):
        pad = jnp.pad(p, ((0, 0), (0, 0), (1, 1), (1, 1)))
        left = p - pad[:, :, 1:-1, :-2]
        right = p - pad[:, :, 1:-1, 2:]
        up = p - pad[:, :, :-2, 1:-1]
        down = p - pad[:, :, 2:, 1:-1]
        return left, right, up, down

    ol, orr, ou, od = directional(op)
    el, err, eu, ed = directional(ep)
    return (ol - el) ** 2 + (orr - err) ** 2 + (ou - eu) ** 2 + (od - ed) ** 2


if __name__ == "__main__":
    key = jax.random.PRNGKey(0)
    k1, k2 = jax.random.split(key)
    org = jax.random.uniform(k1, (2, 4, 16, 16), dtype=jnp.float32)
    enhance = jax.random.uniform(k2, (2, 4, 16, 16), dtype=jnp.float32)

    out = l_spa_pallas(org, enhance)
    out = jax.block_until_ready(out)

    ref = l_spa_ref(org, enhance)
    assert out.shape == (2, 1, 4, 4), out.shape
    assert jnp.allclose(out, ref, atol=1e-5, rtol=1e-5), float(jnp.max(jnp.abs(out - ref)))

    print("KERNEL_OK")
</pallas_src>

<mosaic_0001>
module attributes {stable_mosaic.version = 11 : i64} {
  func.func @_l_spa_kernel(%arg0: i32, %arg1: memref<1x64x16xf32, #tpu.memory_space<vmem>>, %arg2: memref<1x64x16xf32, #tpu.memory_space<vmem>>, %arg3: memref<16x12xf32, #tpu.memory_space<vmem>>, %arg4: memref<12x64xf32, #tpu.memory_space<vmem>>, %arg5: memref<1x4x4xf32, #tpu.memory_space<vmem>>, %arg6: memref<64x12xf32, #tpu.memory_space<vmem>>) attributes {dimension_semantics = [#tpu.dimension_semantics<parallel>], iteration_bounds = array<i64: 2>, scalar_prefetch = 0 : i64, scratch_operands = 1 : i64, tpu.core_type = #tpu.core_type<tc>, window_params = [{transform_indices = @transform_0, window_bounds = array<i64: 1, 64, 16>}, {transform_indices = @transform_1, window_bounds = array<i64: 1, 64, 16>}, {pipeline_mode = #tpu.pipeline_mode<synchronous>, transform_indices = @transform_2, window_bounds = array<i64: 16, 12>}, {pipeline_mode = #tpu.pipeline_mode<synchronous>, transform_indices = @transform_3, window_bounds = array<i64: 12, 64>}, {transform_indices = @transform_4, window_bounds = array<i64: 1, 4, 4>}]} {
    %c0 = arith.constant 0 : index
    %c0_0 = arith.constant 0 : index
    %0 = vector.load %arg3[%c0, %c0_0] : memref<16x12xf32, #tpu.memory_space<vmem>>, vector<16x12xf32>
    %c0_1 = arith.constant 0 : index
    %c0_2 = arith.constant 0 : index
    %1 = vector.load %arg4[%c0_1, %c0_2] : memref<12x64xf32, #tpu.memory_space<vmem>>, vector<12x64xf32>
    %c0_3 = arith.constant 0 : index
    %c0_4 = arith.constant 0 : index
    %c0_5 = arith.constant 0 : index
    %2 = vector.load %arg1[%c0_3, %c0_4, %c0_5] : memref<1x64x16xf32, #tpu.memory_space<vmem>>, vector<1x64x16xf32>
    %3 = vector.shape_cast %2 : vector<1x64x16xf32> to vector<64x16xf32>
    %c0_6 = arith.constant 0 : index
    %c0_7 = arith.constant 0 : index
    %c0_8 = arith.constant 0 : index
    %4 = vector.load %arg2[%c0_6, %c0_7, %c0_8] : memref<1x64x16xf32, #tpu.memory_space<vmem>>, vector<1x64x16xf32>
    %5 = vector.shape_cast %4 : vector<1x64x16xf32> to vector<64x16xf32>
    %cst = arith.constant dense<0.000000e+00> : vector<64x12xf32>
    %6 = tpu.matmul %3, %0, %cst {dimension_numbers = #tpu.dot_dimension_numbers<[1], [0], [0], [1], [0, 0, 1, 1], [], []>} : vector<64x16xf32>, vector<16x12xf32>, vector<64x12xf32> -> vector<64x12xf32>
    %cst_9 = arith.constant dense<0.000000e+00> : vector<64x12xf32>
    %7 = tpu.matmul %5, %0, %cst_9 {dimension_numbers = #tpu.dot_dimension_numbers<[1], [0], [0], [1], [0, 0, 1, 1], [], []>} : vector<64x16xf32>, vector<16x12xf32>, vector<64x12xf32> -> vector<64x12xf32>
    %8 = arith.subf %6, %7 : vector<64x12xf32>
    %c0_10 = arith.constant 0 : index
    %c0_11 = arith.constant 0 : index
    %9 = vector.load %arg6[%c0_10, %c0_11] : memref<64x12xf32, #tpu.memory_space<vmem>>, vector<64x12xf32>
    tpu.vector_store %arg6[%c0_10, %c0_11], %8 {strides = array<i32>} : memref<64x12xf32, #tpu.memory_space<vmem>>, vector<64x12xf32>,
    %c0_i32 = arith.constant 0 : i32
    %c64_i32 = arith.constant 64 : i32
    %10 = arith.muli %c0_i32, %c64_i32 : i32
    %11 = tpu.assume_multiple %10, 64 : i32
    %12 = arith.index_cast %11 : i32 to index
    %c0_12 = arith.constant 0 : index
    %13 = vector.load %arg6[%12, %c0_12] : memref<64x12xf32, #tpu.memory_space<vmem>>, vector<64x12xf32>
    %cst_13 = arith.constant dense<0.000000e+00> : vector<12x12xf32>
    %14 = tpu.matmul %1, %13, %cst_13 {dimension_numbers = #tpu.dot_dimension_numbers<[1], [0], [0], [1], [0, 0, 1, 1], [], []>} : vector<12x64xf32>, vector<64x12xf32>, vector<12x12xf32> -> vector<12x12xf32>
    %15 = vector.extract_strided_slice %14 {offsets = [0, 4], sizes = [4, 4], strides = [1, 1]} : vector<12x12xf32> to vector<4x4xf32>
    %16 = vector.extract_strided_slice %14 {offsets = [0, 8], sizes = [4, 4], strides = [1, 1]} : vector<12x12xf32> to vector<4x4xf32>
    %17 = vector.extract_strided_slice %14 {offsets = [4, 0], sizes = [4, 4], strides = [1, 1]} : vector<12x12xf32> to vector<4x4xf32>
    %18 = vector.extract_strided_slice %14 {offsets = [8, 0], sizes = [4, 4], strides = [1, 1]} : vector<12x12xf32> to vector<4x4xf32>
    %19 = arith.mulf %15, %15 : vector<4x4xf32>
    %20 = arith.mulf %16, %16 : vector<4x4xf32>
    %21 = arith.addf %19, %20 : vector<4x4xf32>
    %22 = arith.mulf %17, %17 : vector<4x4xf32>
    %23 = arith.addf %21, %22 : vector<4x4xf32>
    %24 = arith.mulf %18, %18 : vector<4x4xf32>
    %25 = arith.addf %23, %24 : vector<4x4xf32>
    %26 = arith.index_cast %c0_i32 : i32 to index
    %c0_14 = arith.constant 0 : index
    %c0_15 = arith.constant 0 : index
    %27 = vector.load %arg5[%26, %c0_14, %c0_15] : memref<1x4x4xf32, #tpu.memory_space<vmem>>, vector<1x4x4xf32>
    %28 = vector.shape_cast %27 : vector<1x4x4xf32> to vector<4x4xf32>
    %29 = vector.shape_cast %25 : vector<4x4xf32> to vector<1x4x4xf32>
    tpu.vector_store %arg5[%26, %c0_14, %c0_15], %29 {strides = array<i32>} : memref<1x4x4xf32, #tpu.memory_space<vmem>>, vector<1x4x4xf32>,
    %c1_i32 = arith.constant 1 : i32
    return
  }
  func.func @transform_0(%arg0: i32) -> (i32, i32, i32) {
    %c0_i32 = arith.constant 0 : i32
    %c0_i32_0 = arith.constant 0 : i32
    %c0_i32_1 = arith.constant 0 : i32
    return %arg0, %c0_i32, %c0_i32_0 : i32, i32, i32
  }
  func.func @transform_1(%arg0: i32) -> (i32, i32, i32) {
    %c0_i32 = arith.constant 0 : i32
    %c0_i32_0 = arith.constant 0 : i32
    %c0_i32_1 = arith.constant 0 : i32
    return %arg0, %c0_i32, %c0_i32_0 : i32, i32, i32
  }
  func.func @transform_2(%arg0: i32) -> (i32, i32) {
    %c0_i32 = arith.constant 0 : i32
    %c0_i32_0 = arith.constant 0 : i32
    %c0_i32_1 = arith.constant 0 : i32
    return %c0_i32, %c0_i32_0 : i32, i32
  }
  func.func @transform_3(%arg0: i32) -> (i32, i32) {
    %c0_i32 = arith.constant 0 : i32
    %c0_i32_0 = arith.constant 0 : i32
    %c0_i32_1 = arith.constant 0 : i32
    return %c0_i32, %c0_i32_0 : i32, i32
  }
  func.func @transform_4(%arg0: i32) -> (i32, i32, i32) {
    %c0_i32 = arith.constant 0 : i32
    %c0_i32_0 = arith.constant 0 : i32
    %c0_i32_1 = arith.constant 0 : i32
    return %arg0, %c0_i32, %c0_i32_0 : i32, i32, i32
  }
}

</mosaic_0001>

<llo_original>
// kernel: tpu_custom_call.1
$region0: #{tpu_custom_call.1}
  #allocation0 [shape = 'u32[]', space=smem, size = 0x4, offset = 0x4, fixed_abs, tag = 'smem constant byte address 0x4 - core index']
  #allocation1 [shape = 'u32[144,128]{1,0:T(1,128)}', space=vmem, size = 0x12000, scoped, tag = 'internal scratch']
  #allocation2 [shape = 'f32[64,12]{1,0:T(8,128)}', space=vmem, size = 0x8000, scoped, tag = 'scratch operand']
  %s0 = inlined_call_operand.vmem [shape: f32[2,64,16], index: 0, kind: input, shape index: {}]
  %s1 = inlined_call_operand.vmem [shape: f32[2,64,16], index: 1, kind: input, shape index: {}]
  %s2 = inlined_call_operand.vmem [shape: f32[16,12], index: 2, kind: input, shape index: {}]
  %s3 = inlined_call_operand.vmem [shape: f32[12,64], index: 3, kind: input, shape index: {}]
  %s4 = inlined_call_operand.hbm [shape: f32[2,4,4], index: 4, kind: output, shape index: {}]
  %s5 = sld [smem:[#allocation0]]
  $region49: #{tpu_custom_call.1} parent=0
    _
  %s7 = ssub.s32 1, %s5
  %s8 = scalar_select 0, %s7, %s5
  $region1: #{tpu_custom_call.1} parent=0
    #allocation3 [shape = 'u8[4096]{0}', space=vmem, size = 0x1000, scoped, tag = 'output window, operand 0']
    #allocation4 [shape = 's32[2]{0}', space=sflag, size = 0x8, scoped, tag = 'scoped memory for tpu_custom_call.1']
    %9 = vsyncpa [#allocation4], 0
    %s10 = scalar_lea.sflag [#allocation4], 1
    %11 = vsyncpa %s10, 0
    loop: start=0, step=1, limit=4
    $region2: #{tpu_custom_call.1} parent=1 // loop_pre_header
      _
    $region3: #{tpu_custom_call.1} parent=1 // loop_header
      %s13 = sphi 0, %s17
      %p14 = scmp.ge.s32.totalorder %s13, 4
      %s23 = sphi 0, %s25
      %s26 = sphi 0, %s23
      %s27 = sphi 0, %s26
      %s43 = sphi 0, %s27
      %s49 = sphi 0, %s51
      %s52 = sphi 0, %s49
      %s53 = sphi 0, %s52
      %s69 = sphi 0, %s53
      %s73 = sphi 0, %s73
      %s75 = sphi 0, %s73
      %s76 = sphi 0, %s75
      %s90 = sphi 0, %s76
      %s94 = sphi 0, %s94
      %s96 = sphi 0, %s94
      %s97 = sphi 0, %s96
      %s111 = sphi 0, %s97
      %s117 = sphi 0, %s119
      %s120 = sphi 0, %s117
      %s121 = sphi 0, %s120
      %s137 = sphi 0, %s121
    $region4: #{tpu_custom_call.1} parent=1 // loop_header_branch
      %16 = sbr.rel (%p14) target = $region8
    $region5: #{tpu_custom_call.1} parent=1 // loop_body
      %s18 = ssub.s32 %s13, 1
      %s19 = ssub.s32 %s13, 2
      %s20 = sadd.s32 %s13, 1
      %s21 = ssub.s32 %s13, %s20
      %p22 = scmp.eq.s32.totalorder %s21, 0
      %s24 = sadd.s32 %s23, 1
      %s25 = scalar_select %p22, %s23, %s24
      %p28 = pneg %p22
      %p29 = scmp.eq.s32.totalorder %s13, 1
      %p30 = por %p28, %p29
      %p31 = scmp.ne.s32.totalorder %s23, %s26
      %p32 = scmp.eq.s32.totalorder %s13, 0
      %p33 = por %p31, %p32
      %p34 = scmp.ne.s32.totalorder %s23, %s26
      %p35 = scmp.eq.s32.totalorder %s18, 1
      %p36 = por %p34, %p35
      %p37 = scmp.ne.s32.totalorder %s26, %s27
      %p38 = scmp.eq.s32.totalorder %s18, 0
      %p39 = por %p37, %p38
      %p40 = scmp.ne.s32.totalorder %s26, %s27
      %p41 = scmp.eq.s32.totalorder %s19, 1
      %p42 = por %p40, %p41
      %p44 = scmp.ne.s32.totalorder %s27, %s43
      %p45 = scmp.eq.s32.totalorder %s19, 0
      %p46 = por %p44, %p45
      %s47 = ssub.s32 %s13, %s20
      %p48 = scmp.eq.s32.totalorder %s47, 0
      %s50 = sadd.s32 %s49, 1
      %s51 = scalar_select %p48, %s49, %s50
      %p54 = pneg %p48
      %p55 = scmp.eq.s32.totalorder %s13, 1
      %p56 = por %p54, %p55
      %p57 = scmp.ne.s32.totalorder %s49, %s52
      %p58 = scmp.eq.s32.totalorder %s13, 0
      %p59 = por %p57, %p58
      %p60 = scmp.ne.s32.totalorder %s49, %s52
      %p61 = scmp.eq.s32.totalorder %s18, 1
      %p62 = por %p60, %p61
      %p63 = scmp.ne.s32.totalorder %s52, %s53
      %p64 = scmp.eq.s32.totalorder %s18, 0
      %p65 = por %p63, %p64
      %p66 = scmp.ne.s32.totalorder %s52, %s53
      %p67 = scmp.eq.s32.totalorder %s19, 1
      %p68 = por %p66, %p67
      %p70 = scmp.ne.s32.totalorder %s53, %s69
      %p71 = scmp.eq.s32.totalorder %s19, 0
      %p72 = por %p70, %p71
      %s74 = sadd.s32 %s73, 1
      %p77 = scmp.eq.s32.totalorder %s13, 1
      %p78 = scmp.ne.s32.totalorder %s73, %s75
      %p79 = scmp.eq.s32.totalorder %s13, 0
      %p80 = por %p78, %p79
      %p81 = scmp.ne.s32.totalorder %s73, %s75
      %p82 = scmp.eq.s32.totalorder %s18, 1
      %p83 = por %p81, %p82
      %p84 = scmp.ne.s32.totalorder %s75, %s76
      %p85 = scmp.eq.s32.totalorder %s18, 0
      %p86 = por %p84, %p85
      %p87 = scmp.ne.s32.totalorder %s75, %s76
      %p88 = scmp.eq.s32.totalorder %s19, 1
      %p89 = por %p87, %p88
      %p91 = scmp.ne.s32.totalorder %s76, %s90
      %p92 = scmp.eq.s32.totalorder %s19, 0
      %p93 = por %p91, %p92
      %s95 = sadd.s32 %s94, 1
      %p98 = scmp.eq.s32.totalorder %s13, 1
      %p99 = scmp.ne.s32.totalorder %s94, %s96
      %p100 = scmp.eq.s32.totalorder %s13, 0
      %p101 = por %p99, %p100
      %p102 = scmp.ne.s32.totalorder %s94, %s96
      %p103 = scmp.eq.s32.totalorder %s18, 1
      %p104 = por %p102, %p103
      %p105 = scmp.ne.s32.totalorder %s96, %s97
      %p106 = scmp.eq.s32.totalorder %s18, 0
      %p107 = por %p105, %p106
      %p108 = scmp.ne.s32.totalorder %s96, %s97
      %p109 = scmp.eq.s32.totalorder %s19, 1
      %p110 = por %p108, %p109
      %p112 = scmp.ne.s32.totalorder %s97, %s111
      %p113 = scmp.eq.s32.totalorder %s19, 0
      %p114 = por %p112, %p113
      %s115 = ssub.s32 %s13, %s20
      %p116 = scmp.eq.s32.totalorder %s115, 0
      %s118 = sadd.s32 %s117, 1
      %s119 = scalar_select %p116, %s117, %s118
      %p122 = pneg %p116
      %p123 = scmp.eq.s32.totalorder %s13, 1
      %p124 = por %p122, %p123
      %p125 = scmp.ne.s32.totalorder %s117, %s120
      %p126 = scmp.eq.s32.totalorder %s13, 0
      %p127 = por %p125, %p126
      %p128 = scmp.ne.s32.totalorder %s117, %s120
      %p129 = scmp.eq.s32.totalorder %s18, 1
      %p130 = por %p128, %p129
      %p131 = scmp.ne.s32.totalorder %s120, %s121
      %p132 = scmp.eq.s32.totalorder %s18, 0
      %p133 = por %p131, %p132
      %p134 = scmp.ne.s32.totalorder %s120, %s121
      %p135 = scmp.eq.s32.totalorder %s19, 1
      %p136 = por %p134, %p135
      %p138 = scmp.ne.s32.totalorder %s121, %s137
      %p139 = scmp.eq.s32.totalorder %s19, 0
      %p140 = por %p138, %p139
      %p141 = scmp.le.s32.totalorder 1, %s13
      %p142 = scmp.lt.s32.totalorder %s13, 3
      %p143 = pnand %p141, %p142
      %p144 = pneg %p143
      // Predicated region
      $region9: #{tpu_custom_call.1} parent=5 // pred_check
        _
      $region10: #{tpu_custom_call.1} parent=5 // pred_check_branch
        %146 = sbr.rel (%p143) target = $region12
      $region11: #{tpu_custom_call.1} parent=5 // pred_region
        %s147 = ssub.s32 %s13, 1
        // Predicated region
        $region13: #{tpu_custom_call.1} parent=11 // pred_check
          %p148 = pneg %p86
        $region14: #{tpu_custom_call.1} parent=11 // pred_check_branch
          %150 = sbr.rel (%p148) target = $region16
        $region15: #{tpu_custom_call.1} parent=11 // pred_region
          _
        $region16: #{tpu_custom_call.1} parent=11 // pred_fallthru
          _
        // Predicated region
        $region17: #{tpu_custom_call.1} parent=11 // pred_check
          %p151 = pneg %p107
        $region18: #{tpu_custom_call.1} parent=11 // pred_check_branch
          %153 = sbr.rel (%p151) target = $region20
        $region19: #{tpu_custom_call.1} parent=11 // pred_region
          _
        $region20: #{tpu_custom_call.1} parent=11 // pred_fallthru
          _
      $region12: #{tpu_custom_call.1} parent=5 // pred_fallthru
        _
      %p154 = scmp.lt.s32.totalorder %s13, 2
      // Predicated region
      $region21: #{tpu_custom_call.1} parent=5 // pred_check
        %p155 = pneg %p154
      $region22: #{tpu_custom_call.1} parent=5 // pred_check_branch
        %157 = sbr.rel (%p155) target = $region24
      $region23: #{tpu_custom_call.1} parent=5 // pred_region
        // Predicated region
        $region25: #{tpu_custom_call.1} parent=23 // pred_check
          %p158 = pneg %p33
        $region26: #{tpu_custom_call.1} parent=23 // pred_check_branch
          %160 = sbr.rel (%p158) target = $region28
        $region27: #{tpu_custom_call.1} parent=23 // pred_region
          %p161 = scmp.lt.s32.totalorder %s13, 1
          %s162 = scalar_select %p161, %s13, 1
          %s163 = smul.addr %s162, 8
          %s164 = smul.addr %s163, 8
          %s165 = scalar_lea.vmem %s0, %s164
        $region28: #{tpu_custom_call.1} parent=23 // pred_fallthru
          _
        // Predicated region
        $region29: #{tpu_custom_call.1} parent=23 // pred_check
          %p166 = pneg %p59
        $region30: #{tpu_custom_call.1} parent=23 // pred_check_branch
          %168 = sbr.rel (%p166) target = $region32
        $region31: #{tpu_custom_call.1} parent=23 // pred_region
          %p169 = scmp.lt.s32.totalorder %s13, 1
          %s170 = scalar_select %p169, %s13, 1
          %s171 = smul.addr %s170, 8
          %s172 = smul.addr %s171, 8
          %s173 = scalar_lea.vmem %s1, %s172
        $region32: #{tpu_custom_call.1} parent=23 // pred_fallthru
          _
      $region24: #{tpu_custom_call.1} parent=5 // pred_fallthru
        _
      %p174 = scmp.le.s32.totalorder 1, %s13
      %p175 = scmp.lt.s32.totalorder %s13, 3
      %p176 = pnand %p174, %p175
      %p177 = pneg %p176
      // Predicated region
      $region33: #{tpu_custom_call.1} parent=5 // pred_check
        _
      $region34: #{tpu_custom_call.1} parent=5 // pred_check_branch
        %179 = sbr.rel (%p176) target = $region36
      $region35: #{tpu_custom_call.1} parent=5 // pred_region
        %s180 = ssub.s32 %s13, 1
        %p181 = scmp.lt.s32.totalorder %s18, 1
        %s182 = scalar_select %p181, %s18, 1
        %s183 = smul.addr %s182, 8
        %s184 = smul.addr %s183, 8
        %s185 = scalar_lea.vmem %s0, %s184
        %p186 = pneg %p39
        %p187 = pneg %p36
        %p188 = scmp.lt.s32.totalorder %s18, 1
        %s189 = scalar_select %p188, %s18, 1
        %s190 = smul.addr %s189, 8
        %s191 = smul.addr %s190, 8
        %s192 = scalar_lea.vmem %s1, %s191
        %p193 = pneg %p65
        %p194 = pneg %p62
        %p195 = pneg %p86
        %p196 = pneg %p83
        %p197 = pneg %p107
        %p198 = pneg %p104
        %p199 = pneg %p133
        %p200 = pneg %p130
        %s201 = sand.u32 %s120, 1
        %s202 = scalar_lea.sflag [#allocation4], %s201
        %s203 = sand.u32 %s120, 1
        %s204 = smul.addr %s203, 4
        %s205 = scalar_lea.vmem [#allocation3], %s204
        %p206 = scmp.lt.s32.totalorder %s18, 1
        %s207 = scalar_select %p206, %s18, 1
        %s208 = smul.addr %s207, 8
        %s209 = smul.addr %s208, 8
        %s210 = scalar_lea.vmem %s0, %s209
        %p211 = scmp.lt.s32.totalorder %s18, 1
        %s212 = scalar_select %p211, %s18, 1
        %s213 = smul.addr %s212, 8
        %s214 = smul.addr %s213, 8
        %s215 = scalar_lea.vmem %s1, %s214
        %v216 = vld [vmem:[%s2] sm:$0xff]
        %v217 = vld [vmem:[%s2 + $0x8] sm:$0xff]
        %v218 = vld [vmem:[%s3] sm:$0xff]
        %v219 = vld [vmem:[%s3 + $0x8] sm:$0xf]
        %v220 = vld [vmem:[%s210] sm:$0xff]
        %v221 = vld [vmem:[%s210 + $0x8] sm:$0xff]
        %v222 = vld [vmem:[%s210 + $0x10] sm:$0xff]
        %v223 = vld [vmem:[%s210 + $0x18] sm:$0xff]
        %v224 = vld [vmem:[%s210 + $0x20] sm:$0xff]
        %v225 = vld [vmem:[%s210 + $0x28] sm:$0xff]
        %v226 = vld [vmem:[%s210 + $0x30] sm:$0xff]
        %v227 = vld [vmem:[%s210 + $0x38] sm:$0xff]
        %v228 = vld [vmem:[%s215] sm:$0xff]
        %v229 = vld [vmem:[%s215 + $0x8] sm:$0xff]
        %v230 = vld [vmem:[%s215 + $0x10] sm:$0xff]
        %v231 = vld [vmem:[%s215 + $0x18] sm:$0xff]
        %v232 = vld [vmem:[%s215 + $0x20] sm:$0xff]
        %v233 = vld [vmem:[%s215 + $0x28] sm:$0xff]
        %v234 = vld [vmem:[%s215 + $0x30] sm:$0xff]
        %v235 = vld [vmem:[%s215 + $0x38] sm:$0xff]
        %vm236 = vcmask 130048
        %v238 = vsel %vm236, %v220, 0
        %v241 = vsel %vm236, %v221, 0
        %v244 = vsel %vm236, %v222, 0
        %v247 = vsel %vm236, %v223, 0
        %v250 = vsel %vm236, %v224, 0
        %v253 = vsel %vm236, %v225, 0
        %v256 = vsel %vm236, %v226, 0
        %v259 = vsel %vm236, %v227, 0
        %261 = vmatprep.subr.mxu0 0.0
        %262 = vmatpush1.msra.mxu0 %v216
        %263 = vmatprep.subr.mxu0 0.0
        %264 = vmatpush1.msra.mxu0 %v217
        %265 = vmatprep.subr.mxu0 0.0
        %266 = vmatpush1.msra.mxu0 0.0
        %267 = vmatprep.subr.mxu0 0.0
        %268 = vmatpush1.msra.mxu0 0.0
        %269 = vmatprep.subr.mxu0 0.0
        %270 = vmatpush1.msra.mxu0 0.0
        %271 = vmatprep.subr.mxu0 0.0
        %272 = vmatpush1.msra.mxu0 0.0
        %273 = vmatprep.subr.mxu0 0.0
        %274 = vmatpush1.msra.mxu0 0.0
        %275 = vmatprep.subr.mxu0 0.0
        %276 = vmatpush1.msra.mxu0 0.0
        %277 = vmatprep.subr.mxu0 0.0
        %278 = vmatpush1.msra.mxu0 0.0
        %279 = vmatprep.subr.mxu0 0.0
        %280 = vmatpush1.msra.mxu0 0.0
        %281 = vmatprep.subr.mxu0 0.0
        %282 = vmatpush1.msra.mxu0 0.0
        %283 = vmatprep.subr.mxu0 0.0
        %284 = vmatpush1.msra.mxu0 0.0
        %285 = vmatprep.subr.mxu0 0.0
        %286 = vmatpush1.msra.mxu0 0.0
        %287 = vmatprep.subr.mxu0 0.0
        %288 = vmatpush1.msra.mxu0 0.0
        %289 = vmatprep.subr.mxu0 0.0
        %290 = vmatpush1.msra.mxu0 0.0
        %291 = vmatprep.subr.mxu0 0.0
        %292 = vmatpush1.msra.mxu0 0.0
        %293 = vmatprep.subr.mxu0 0.0
        %294 = vmatpush1.msra.mxu0 0.0
        %295 = vmatprep.subr.mxu0 0.0
        %296 = vmatpush1.msra.mxu0 0.0
        %297 = vmatprep.subr.mxu0 0.0
        %298 = vmatpush1.msra.mxu0 0.0
        %299 = vmatprep.subr.mxu0 0.0
        %300 = vmatpush1.msra.mxu0 0.0
        %301 = vmatprep.subr.mxu0 0.0
        %302 = vmatpush1.msra.mxu0 0.0
        %303 = vmatprep.subr.mxu0 0.0
        %304 = vmatpush1.msra.mxu0 0.0
        %305 = vmatprep.subr.mxu0 0.0
        %306 = vmatpush1.msra.mxu0 0.0
        %307 = vmatprep.subr.mxu0 0.0
        %308 = vmatpush1.msra.mxu0 0.0
        %309 = vmatprep.subr.mxu0 0.0
        %310 = vmatpush1.msra.mxu0 0.0
        %311 = vmatprep.subr.mxu0 0.0
        %312 = vmatpush1.msra.mxu0 0.0
        %313 = vmatprep.subr.mxu0 0.0
        %314 = vmatpush1.msra.mxu0 0.0
        %315 = vmatprep.subr.mxu0 0.0
        %316 = vmatpush1.msra.mxu0 0.0
        %317 = vmatprep.subr.mxu0 0.0
        %318 = vmatpush1.msra.mxu0 0.0
        %319 = vmatprep.subr.mxu0 0.0
        %320 = vmatpush1.msra.mxu0 0.0
        %321 = vmatprep.subr.mxu0 0.0
        %322 = vmatpush1.msra.mxu0 0.0
        %323 = vmatprep.subr.mxu0 0.0
        %324 = vmatpush1.msra.mxu0 0.0
        %325 = vmatprep.mubr.f32.mxu0 0.0
        %326 = vmatmul.mubr.f32.gmra.mrb[0].mxu0 %v238
        %v327 = vpop.f32.mrb[0].mxu0
        %v328 = vadd.f32 0.0, %v327
        %v329 = vpop.f32.mrb[0].mxu0
        %330 = vmatprep.mubr.f32.mxu0 0.0
        %331 = vmatmul.mubr.f32.gmra.mrb[0].mxu0 %v241
        %v332 = vpop.f32.mrb[0].mxu0
        %v333 = vadd.f32 0.0, %v332
        %v334 = vpop.f32.mrb[0].mxu0
        %335 = vmatprep.mubr.f32.mxu0 0.0
        %336 = vmatmul.mubr.f32.gmra.mrb[0].mxu0 %v244
        %v337 = vpop.f32.mrb[0].mxu0
        %v338 = vadd.f32 0.0, %v337
        %v339 = vpop.f32.mrb[0].mxu0
        %340 = vmatprep.mubr.f32.mxu0 0.0
        %341 = vmatmul.mubr.f32.gmra.mrb[0].mxu0 %v247
        %v342 = vpop.f32.mrb[0].mxu0
        %v343 = vadd.f32 0.0, %v342
        %v344 = vpop.f32.mrb[0].mxu0
        %345 = vmatprep.mubr.f32.mxu0 0.0
        %346 = vmatmul.mubr.f32.gmra.mrb[0].mxu0 %v250
        %v347 = vpop.f32.mrb[0].mxu0
        %v348 = vadd.f32 0.0, %v347
        %v349 = vpop.f32.mrb[0].mxu0
        %350 = vmatprep.mubr.f32.mxu0 0.0
        %351 = vmatmul.mubr.f32.gmra.mrb[0].mxu0 %v253
        %v352 = vpop.f32.mrb[0].mxu0
        %v353 = vadd.f32 0.0, %v352
        %v354 = vpop.f32.mrb[0].mxu0
        %355 = vmatprep.mubr.f32.mxu0 0.0
        %356 = vmatmul.mubr.f32.gmra.mrb[0].mxu0 %v256
        %v357 = vpop.f32.mrb[0].mxu0
        %v358 = vadd.f32 0.0, %v357
        %v359 = vpop.f32.mrb[0].mxu0
        %360 = vmatprep.mubr.f32.mxu0 0.0
        %361 = vmatmul.mubr.f32.gmra.mrb[0].mxu0 %v259
        %v362 = vpop.f32.mrb[0].mxu0
        %v363 = vadd.f32 0.0, %v362
        %v364 = vpop.f32.mrb[0].mxu0
        %365 = vdwg.mxu0
        %v367 = vsel %vm236, %v228, 0
        %v370 = vsel %vm236, %v229, 0
        %v373 = vsel %vm236, %v230, 0
        %v376 = vsel %vm236, %v231, 0
        %v379 = vsel %vm236, %v232, 0
        %v382 = vsel %vm236, %v233, 0
        %v385 = vsel %vm236, %v234, 0
        %v388 = vsel %vm236, %v235, 0
        %390 = vmatprep.subr.mxu0 0.0
        %391 = vmatpush1.msra.mxu0 %v216
        %392 = vmatprep.subr.mxu0 0.0
        %393 = vmatpush1.msra.mxu0 %v217
        %394 = vmatprep.subr.mxu0 0.0
        %395 = vmatpush1.msra.mxu0 0.0
        %396 = vmatprep.subr.mxu0 0.0
        %397 = vmatpush1.msra.mxu0 0.0
        %398 = vmatprep.subr.mxu0 0.0
        %399 = vmatpush1.msra.mxu0 0.0
        %400 = vmatprep.subr.mxu0 0.0
        %401 = vmatpush1.msra.mxu0 0.0
        %402 = vmatprep.subr.mxu0 0.0
        %403 = vmatpush1.msra.mxu0 0.0
        %404 = vmatprep.subr.mxu0 0.0
        %405 = vmatpush1.msra.mxu0 0.0
        %406 = vmatprep.subr.mxu0 0.0
        %407 = vmatpush1.msra.mxu0 0.0
        %408 = vmatprep.subr.mxu0 0.0
        %409 = vmatpush1.msra.mxu0 0.0
        %410 = vmatprep.subr.mxu0 0.0
        %411 = vmatpush1.msra.mxu0 0.0
        %412 = vmatprep.subr.mxu0 0.0
        %413 = vmatpush1.msra.mxu0 0.0
        %414 = vmatprep.subr.mxu0 0.0
        %415 = vmatpush1.msra.mxu0 0.0
        %416 = vmatprep.subr.mxu0 0.0
        %417 = vmatpush1.msra.mxu0 0.0
        %418 = vmatprep.subr.mxu0 0.0
        %419 = vmatpush1.msra.mxu0 0.0
        %420 = vmatprep.subr.mxu0 0.0
        %421 = vmatpush1.msra.mxu0 0.0
        %422 = vmatprep.subr.mxu0 0.0
        %423 = vmatpush1.msra.mxu0 0.0
        %424 = vmatprep.subr.mxu0 0.0
        %425 = vmatpush1.msra.mxu0 0.0
        %426 = vmatprep.subr.mxu0 0.0
        %427 = vmatpush1.msra.mxu0 0.0
        %428 = vmatprep.subr.mxu0 0.0
        %429 = vmatpush1.msra.mxu0 0.0
        %430 = vmatprep.subr.mxu0 0.0
        %431 = vmatpush1.msra.mxu0 0.0
        %432 = vmatprep.subr.mxu0 0.0
        %433 = vmatpush1.msra.mxu0 0.0
        %434 = vmatprep.subr.mxu0 0.0
        %435 = vmatpush1.msra.mxu0 0.0
        %436 = vmatprep.subr.mxu0 0.0
        %437 = vmatpush1.msra.mxu0 0.0
        %438 = vmatprep.subr.mxu0 0.0
        %439 = vmatpush1.msra.mxu0 0.0
        %440 = vmatprep.subr.mxu0 0.0
        %441 = vmatpush1.msra.mxu0 0.0
        %442 = vmatprep.subr.mxu0 0.0
        %443 = vmatpush1.msra.mxu0 0.0
        %444 = vmatprep.subr.mxu0 0.0
        %445 = vmatpush1.msra.mxu0 0.0
        %446 = vmatprep.subr.mxu0 0.0
        %447 = vmatpush1.msra.mxu0 0.0
        %448 = vmatprep.subr.mxu0 0.0
        %449 = vmatpush1.msra.mxu0 0.0
        %450 = vmatprep.subr.mxu0 0.0
        %451 = vmatpush1.msra.mxu0 0.0
        %452 = vmatprep.subr.mxu0 0.0
        %453 = vmatpush1.msra.mxu0 0.0
        %454 = vmatprep.mubr.f32.mxu0 0.0
        %455 = vmatmul.mubr.f32.gmra.mrb[0].mxu0 %v367
        %v456 = vpop.f32.mrb[0].mxu0
        %v457 = vadd.f32 0.0, %v456
        %v458 = vpop.f32.mrb[0].mxu0
        %459 = vmatprep.mubr.f32.mxu0 0.0
        %460 = vmatmul.mubr.f32.gmra.mrb[0].mxu0 %v370
        %v461 = vpop.f32.mrb[0].mxu0
        %v462 = vadd.f32 0.0, %v461
        %v463 = vpop.f32.mrb[0].mxu0
        %464 = vmatprep.mubr.f32.mxu0 0.0
        %465 = vmatmul.mubr.f32.gmra.mrb[0].mxu0 %v373
        %v466 = vpop.f32.mrb[0].mxu0
        %v467 = vadd.f32 0.0, %v466
        %v468 = vpop.f32.mrb[0].mxu0
        %469 = vmatprep.mubr.f32.mxu0 0.0
        %470 = vmatmul.mubr.f32.gmra.mrb[0].mxu0 %v376
        %v471 = vpop.f32.mrb[0].mxu0
        %v472 = vadd.f32 0.0, %v471
        %v473 = vpop.f32.mrb[0].mxu0
        %474 = vmatprep.mubr.f32.mxu0 0.0
        %475 = vmatmul.mubr.f32.gmra.mrb[0].mxu0 %v379
        %v476 = vpop.f32.mrb[0].mxu0
        %v477 = vadd.f32 0.0, %v476
        %v478 = vpop.f32.mrb[0].mxu0
        %479 = vmatprep.mubr.f32.mxu0 0.0
        %480 = vmatmul.mubr.f32.gmra.mrb[0].mxu0 %v382
        %v481 = vpop.f32.mrb[0].mxu0
        %v482 = vadd.f32 0.0, %v481
        %v483 = vpop.f32.mrb[0].mxu0
        %484 = vmatprep.mubr.f32.mxu0 0.0
        %485 = vmatmul.mubr.f32.gmra.mrb[0].mxu0 %v385
        %v486 = vpop.f32.mrb[0].mxu0
        %v487 = vadd.f32 0.0, %v486
        %v488 = vpop.f32.mrb[0].mxu0
        %489 = vmatprep.mubr.f32.mxu0 0.0
        %490 = vmatmul.mubr.f32.gmra.mrb[0].mxu0 %v388
        %v491 = vpop.f32.mrb[0].mxu0
        %v492 = vadd.f32 0.0, %v491
        %v493 = vpop.f32.mrb[0].mxu0
        %494 = vdwg.mxu0
        %v495 = vsub.f32 %v328, %v457
        %v496 = vsub.f32 %v333, %v462
        %v497 = vsub.f32 %v338, %v467
        %v498 = vsub.f32 %v343, %v472
        %v499 = vsub.f32 %v348, %v477
        %v500 = vsub.f32 %v353, %v482
        %v501 = vsub.f32 %v358, %v487
        %v502 = vsub.f32 %v363, %v492
        %vm503 = vcmask 97280
        %504 = vst.msk [vmem:[#allocation2] sm:$0xff] %vm503, %v495
        %505 = vst.msk [vmem:[#allocation2 + $0x8] sm:$0xff] %vm503, %v496
        %506 = vst.msk [vmem:[#allocation2 + $0x10] sm:$0xff] %vm503, %v497
        %507 = vst.msk [vmem:[#allocation2 + $0x18] sm:$0xff] %vm503, %v498
        %508 = vst.msk [vmem:[#allocation2 + $0x20] sm:$0xff] %vm503, %v499
        %509 = vst.msk [vmem:[#allocation2 + $0x28] sm:$0xff] %vm503, %v500
        %510 = vst.msk [vmem:[#allocation2 + $0x30] sm:$0xff] %vm503, %v501
        %511 = vst.msk [vmem:[#allocation2 + $0x38] sm:$0xff] %vm503, %v502
        %v512 = vld [vmem:[#allocation2] sm:$0xff]
        %v513 = vld [vmem:[#allocation2 + $0x8] sm:$0xff]
        %v514 = vld [vmem:[#allocation2 + $0x10] sm:$0xff]
        %v515 = vld [vmem:[#allocation2 + $0x18] sm:$0xff]
        %v516 = vld [vmem:[#allocation2 + $0x20] sm:$0xff]
        %v517 = vld [vmem:[#allocation2 + $0x28] sm:$0xff]
        %v518 = vld [vmem:[#allocation2 + $0x30] sm:$0xff]
        %v519 = vld [vmem:[#allocation2 + $0x38] sm:$0xff]
        %vm520 = vcmask 523264
        %v522 = vsel %vm520, %v218, 0
        %v525 = vsel %vm520, %v219, 0
        %527 = vmatprep.subr.mxu0 0.0
        %528 = vmatpush1.msra.mxu0 %v512
        %529 = vmatprep.subr.mxu0 0.0
        %530 = vmatpush1.msra.mxu0 %v513
        %531 = vmatprep.subr.mxu0 0.0
        %532 = vmatpush1.msra.mxu0 %v514
        %533 = vmatprep.subr.mxu0 0.0
        %534 = vmatpush1.msra.mxu0 %v515
        %535 = vmatprep.subr.mxu0 0.0
        %536 = vmatpush1.msra.mxu0 %v516
        %537 = vmatprep.subr.mxu0 0.0
        %538 = vmatpush1.msra.mxu0 %v517
        %539 = vmatprep.subr.mxu0 0.0
        %540 = vmatpush1.msra.mxu0 %v518
        %541 = vmatprep.subr.mxu0 0.0
        %542 = vmatpush1.msra.mxu0 %v519
        %543 = vmatprep.subr.mxu0 0.0
        %544 = vmatpush1.msra.mxu0 0.0
        %545 = vmatprep.subr.mxu0 0.0
        %546 = vmatpush1.msra.mxu0 0.0
        %547 = vmatprep.subr.mxu0 0.0
        %548 = vmatpush1.msra.mxu0 0.0
        %549 = vmatprep.subr.mxu0 0.0
        %550 = vmatpush1.msra.mxu0 0.0
        %551 = vmatprep.subr.mxu0 0.0
        %552 = vmatpush1.msra.mxu0 0.0
        %553 = vmatprep.subr.mxu0 0.0
        %554 = vmatpush1.msra.mxu0 0.0
        %555 = vmatprep.subr.mxu0 0.0
        %556 = vmatpush1.msra.mxu0 0.0
        %557 = vmatprep.subr.mxu0 0.0
        %558 = vmatpush1.msra.mxu0 0.0
        %559 = vmatprep.subr.mxu0 0.0
        %560 = vmatpush1.msra.mxu0 0.0
        %561 = vmatprep.subr.mxu0 0.0
        %562 = vmatpush1.msra.mxu0 0.0
        %563 = vmatprep.subr.mxu0 0.0
        %564 = vmatpush1.msra.mxu0 0.0
        %565 = vmatprep.subr.mxu0 0.0
        %566 = vmatpush1.msra.mxu0 0.0
        %567 = vmatprep.subr.mxu0 0.0
        %568 = vmatpush1.msra.mxu0 0.0
        %569 = vmatprep.subr.mxu0 0.0
        %570 = vmatpush1.msra.mxu0 0.0
        %571 = vmatprep.subr.mxu0 0.0
        %572 = vmatpush1.msra.mxu0 0.0
        %573 = vmatprep.subr.mxu0 0.0
        %574 = vmatpush1.msra.mxu0 0.0
        %575 = vmatprep.subr.mxu0 0.0
        %576 = vmatpush1.msra.mxu0 0.0
        %577 = vmatprep.subr.mxu0 0.0
        %578 = vmatpush1.msra.mxu0 0.0
        %579 = vmatprep.subr.mxu0 0.0
        %580 = vmatpush1.msra.mxu0 0.0
        %581 = vmatprep.subr.mxu0 0.0
        %582 = vmatpush1.msra.mxu0 0.0
        %583 = vmatprep.subr.mxu0 0.0
        %584 = vmatpush1.msra.mxu0 0.0
        %585 = vmatprep.subr.mxu0 0.0
        %586 = vmatpush1.msra.mxu0 0.0
        %587 = vmatprep.subr.mxu0 0.0
        %588 = vmatpush1.msra.mxu0 0.0
        %589 = vmatprep.subr.mxu0 0.0
        %590 = vmatpush1.msra.mxu0 0.0
        %591 = vmatprep.mubr.f32.mxu0 0.0
        %592 = vmatmul.mubr.f32.gmra.mrb[0].mxu0 %v522
        %v593 = vpop.f32.mrb[0].mxu0
        %v594 = vadd.f32 0.0, %v593
        %v595 = vpop.f32.mrb[0].mxu0
        %596 = vmatprep.mubr.f32.mxu0 0.0
        %597 = vmatmul.mubr.f32.gmra.mrb[0].mxu0 %v525
        %v598 = vpop.f32.mrb[0].mxu0
        %v599 = vadd.f32 0.0, %v598
        %v600 = vpop.f32.mrb[0].mxu0
        %601 = vdwg.mxu0
        %v602 = vmul.f32 %v594, %v594
        %604 = vrot.lane.b32.xlu0 %v602, 124
        %v605 = vpop.permute.xlu0 %604
        %v607 = vadd.f32 %v602, %v605
        %v608 = vrot.slane %v602, 4
        %609 = vrot.lane.b32.xlu0 %v608, 4
        %v610 = vpop.permute.xlu0 %609
        %v612 = vadd.f32 %v607, %v610
        %v613 = vmul.f32 %v599, %v599
        %615 = vrot.lane.b32.xlu0 %v613, 4
        %v616 = vpop.permute.xlu0 %615
        %v618 = vadd.f32 %v612, %v616
        %620 = vrot.lane.b32.xlu0 %v618, 124
        %v621 = vpop.permute.xlu0 %620
        %vm623 = vcmask 27648
        %624 = vst.msk [vmem:[%s205] sm:$0xf] %vm623, %v621
        %s625 = sand.u32 %s120, 1
        %s626 = scalar_lea.sflag [#allocation4], %s625
        %s627 = sand.u32 %s120, 1
        %s628 = smul.addr %s627, 4
        %s629 = scalar_lea.vmem [#allocation3], %s628
        // Predicated region
        $region37: #{tpu_custom_call.1} parent=35 // pred_check
          %p630 = pneg %p130
        $region38: #{tpu_custom_call.1} parent=35 // pred_check_branch
          %632 = sbr.rel (%p630) target = $region40
        $region39: #{tpu_custom_call.1} parent=35 // pred_region
          %s634 = ssub.s32 64, 64
          %635 = vsyncadd %s626, %s634
          %s636 = smul.addr %s18, 64
          %s637 = scalar_lea.hbm %s4, %s636
          %s639 = sshll.u32 %s629, 4
          %s640 = int_to_ptr.vmem [resolvable:$true] %s639
          %642 = dma.vmem_to_hbm [thread:$0]  %s640, 64, %s637, %s626
        $region40: #{tpu_custom_call.1} parent=35 // pred_fallthru
          _
      $region36: #{tpu_custom_call.1} parent=5 // pred_fallthru
        _
      %p643 = scmp.le.s32.totalorder 2, %s13
      // Predicated region
      $region41: #{tpu_custom_call.1} parent=5 // pred_check
        %p644 = pneg %p643
      $region42: #{tpu_custom_call.1} parent=5 // pred_check_branch
        %646 = sbr.rel (%p644) target = $region44
      $region43: #{tpu_custom_call.1} parent=5 // pred_region
        %s647 = ssub.s32 %s13, 2
        // Predicated region
        $region45: #{tpu_custom_call.1} parent=43 // pred_check
          %p648 = pneg %p136
        $region46: #{tpu_custom_call.1} parent=43 // pred_check_branch
          %650 = sbr.rel (%p648) target = $region48
        $region47: #{tpu_custom_call.1} parent=43 // pred_region
          %s651 = sand.u32 %s121, 1
          %s652 = scalar_lea.sflag [#allocation4], %s651
          %s653 = sand.u32 %s121, 1
          %s654 = smul.addr %s653, 4
          %s655 = scalar_lea.vmem [#allocation3], %s654
          %656 = dma.done %s652, 64
        $region48: #{tpu_custom_call.1} parent=43 // pred_fallthru
          _
      $region44: #{tpu_custom_call.1} parent=5 // pred_fallthru
        _
    $region6: #{tpu_custom_call.1} parent=1 // loop_footer
      %s17 = sadd.s32 1, %s13
    $region7: #{tpu_custom_call.1} parent=1 // loop_footer_branch
      %12 = sbr.rel target = $region3
    $region8: #{tpu_custom_call.1} parent=1 // loop_exit
      _
    %657 = vsyncpa [#allocation4], 1
    %s658 = scalar_lea.sflag [#allocation4], 1
    %659 = vsyncpa %s658, 1

</llo_original>
